<compile_context>
chip_gen: v6e
topology: v6e:2x2x1
jax: 0.10.0
libtpu: 0.0.40
codegen_flags: <defaults>
</compile_context>

<pallas_src>
import functools

import jax
import jax.numpy as jnp
from jax.experimental import pallas as pl
from jax.experimental.pallas import tpu as pltpu

LN_EPS = 1e-5  # torch.nn.LayerNorm default


def _ln_epilogue(z, p, out_dtype):
    """One-pass LayerNorm over the last dim of f32 z.  p is (3, H) f32."""
    inv_h = 1.0 / z.shape[-1]
    s1 = jnp.sum(z, axis=-1, keepdims=True)
    s2 = jnp.sum(z * z, axis=-1, keepdims=True)
    mean = s1 * inv_h
    var = s2 * inv_h - mean * mean
    inv = jax.lax.rsqrt(var + LN_EPS)
    return ((z - mean) * inv * p[1] + p[2]).astype(out_dtype)


def _residual_norm_kernel_fused(x_ref, w_ref, p_ref, o_ref):
    # K == 1 path (tk == H): no accumulator, dot feeds the LN epilogue directly.
    x = x_ref[...]
    p = p_ref[...].astype(jnp.float32)
    z = jnp.dot(x, w_ref[...], preferred_element_type=jnp.float32)
    z = z + x.astype(jnp.float32) + p[0]
    o_ref[...] = _ln_epilogue(z, p, o_ref.dtype)


def _residual_norm_kernel_ktiled(x_ref, w_ref, p_ref, o_ref, acc_ref, *, tk):
    # x_ref:  (tm, H)  resident row tile (residual + matmul LHS source)
    # w_ref:  (tk, H)  K-slice of the weight
    # p_ref:  (3, H)   packed bias / gamma / beta
    # o_ref:  (tm, H)  output tile (resident across k, written at last k)
    # acc_ref:(tm, H)  f32 accumulator scratch
    k = pl.program_id(1)

    @pl.when(k == 0)
    def _():
        acc_ref[...] = jnp.zeros_like(acc_ref)

    # LHS K-slice taken from the resident row tile; tk is a multiple of 128 so
    # the lane slice stays tile-aligned (no relayout copy).
    kk = pl.multiple_of(k * tk, 128)
    acc_ref[...] += jnp.dot(x_ref[:, pl.ds(kk, tk)], w_ref[...],
                            preferred_element_type=jnp.float32)

    @pl.when(k == pl.num_programs(1) - 1)
    def _():
        p = p_ref[...].astype(jnp.float32)
        # Fold residual + bias into the accumulator in place, then LN from it.
        acc_ref[...] += x_ref[...].astype(jnp.float32) + p[0]
        o_ref[...] = _ln_epilogue(acc_ref[...], p, o_ref.dtype)


def _round_up(x, m):
    return (x + m - 1) // m * m


def _device_vmem_budget():
    cap = 64 * 1024 * 1024  # conservative fallback (v7x per-TC)
    try:
        cap = int(pltpu.get_tpu_info().vmem_capacity_bytes)
    except Exception:
        pass
    # Leave ~20% headroom for compiler-internal scratch and epilogue temps.
    return int(cap * 0.8)


def _pick_tk(H, wi, budget):
    if H % 128 != 0:
        # Block equals the full array dim; fine for small H (see TODO above).
        return H
    # Prefer tk == H (W DMA'd once for the whole grid) when the double-buffered
    # weight fits in half the budget; otherwise K-tile with 128-multiples.
    if 2 * H * H * wi <= budget // 2:
        return H
    for cand in (512, 384, 256, 128):
        if H % cand == 0:
            return cand
    return H


def _vmem_needed(tm, tk, H, xi, wi, k_tiles):
    need = 2 * tm * H * xi            # x row tiles (residual + LHS), double-buffered
    need += 2 * tm * H * xi           # output tiles
    need += 2 * tk * H * wi           # weight K-slices
    if k_tiles > 1:
        need += tm * H * 4            # f32 accumulator scratch
    need += 2 * 8 * H * 4             # packed params (sublane-padded)
    need += 2 * tm * H * 4            # f32 epilogue temporaries margin
    return need


def _pick_tm(rows, tk, H, xi, wi, k_tiles, budget, block_rows):
    tm = _round_up(min(block_rows, _round_up(rows, 8)), 8)
    # Shrink tiles (not the VMEM limit) until the footprint fits the budget.
    while tm > 8 and _vmem_needed(tm, tk, H, xi, wi, k_tiles) > budget:
        tm = max(8, _round_up(tm // 2, 8))
    # Give the "parallel" row axis at least 2 tiles (v7x megacore).
    while pl.cdiv(rows, tm) < 2 and tm > 8:
        tm = max(8, _round_up(tm // 2, 8))
    return tm


@functools.partial(jax.jit, static_argnames=("block_rows",))
def residual_norm(x, w, b, gamma, beta, block_rows=None):
    """LayerNorm(x + x @ w + b) over the last dim.  x: [B, S, H]."""
    B, S, H = x.shape
    rows = B * S
    x2 = x.reshape(rows, H)
    params = jnp.stack([b, gamma, beta]).astype(jnp.float32)  # (3, H)

    xi = x.dtype.itemsize
    wi = w.dtype.itemsize
    budget = _device_vmem_budget()
    if block_rows is None:
        # Bigger row tiles on 128 MiB parts (v5e/v6e), tighter on 64 MiB v7x.
        block_rows = 512 if budget >= (96 << 20) else 256

    tk = _pick_tk(H, wi, budget)
    k_tiles = H // tk
    tm = _pick_tm(rows, tk, H, xi, wi, k_tiles, budget, block_rows)
    row_tiles = pl.cdiv(rows, tm)

    needed = _vmem_needed(tm, tk, H, xi, wi, k_tiles)
    vmem_limit = int(min(budget, max(needed + (4 << 20), 32 << 20)))

    if k_tiles == 1:
        grid = (row_tiles,)
        in_specs = [
            pl.BlockSpec((tm, H), lambda i: (i, 0)),   # x row tile
            pl.BlockSpec((H, H), lambda i: (0, 0)),    # full weight (DMA'd once)
            pl.BlockSpec((3, H), lambda i: (0, 0)),    # packed bias/gamma/beta
        ]
        out_specs = pl.BlockSpec((tm, H), lambda i: (i, 0))
        scratch_shapes = []
        kernel = _residual_norm_kernel_fused
        dims = ("parallel",)
    else:
        grid = (row_tiles, k_tiles)
        in_specs = [
            pl.BlockSpec((tm, H), lambda i, k: (i, 0)),   # x row tile (resident over k)
            pl.BlockSpec((tk, H), lambda i, k: (k, 0)),   # W K-slice
            pl.BlockSpec((3, H), lambda i, k: (0, 0)),    # packed bias/gamma/beta
        ]
        out_specs = pl.BlockSpec((tm, H), lambda i, k: (i, 0))
        scratch_shapes = [pltpu.VMEM((tm, H), jnp.float32)]
        kernel = functools.partial(_residual_norm_kernel_ktiled, tk=tk)
        dims = ("parallel", "arbitrary")

    out = pl.pallas_call(
        kernel,
        out_shape=jax.ShapeDtypeStruct((rows, H), x.dtype),
        grid_spec=pltpu.PrefetchScalarGridSpec(
            num_scalar_prefetch=0,
            grid=grid,
            in_specs=in_specs,
            out_specs=out_specs,
            scratch_shapes=scratch_shapes,
        ),
        compiler_params=pltpu.CompilerParams(
            dimension_semantics=dims,
            vmem_limit_bytes=vmem_limit,
        ),
    )(x2, w, params)

    return out.reshape(B, S, H)


def _reference(x, w, b, gamma, beta):
    z = x + (x @ w + b)
    mean = z.mean(-1, keepdims=True)
    var = ((z - mean) ** 2).mean(-1, keepdims=True)
    return (z - mean) / jnp.sqrt(var + LN_EPS) * gamma + beta


if __name__ == "__main__":
    B, S, H = 2, 8, 32
    key = jax.random.PRNGKey(0)
    kx, kw, kb = jax.random.split(key, 3)

    x = jax.random.normal(kx, (B, S, H), dtype=jnp.float32)
    # Deterministic "baseModule" (Linear) params, Kaiming-ish scale.
    w = jax.random.normal(kw, (H, H), dtype=jnp.float32) * (1.0 / jnp.sqrt(H))
    b = jax.random.normal(kb, (H,), dtype=jnp.float32) * 0.01
    # Fresh LayerNorm in the PyTorch forward -> default affine params.
    gamma = jnp.ones((H,), dtype=jnp.float32)
    beta = jnp.zeros((H,), dtype=jnp.float32)

    y = residual_norm(x, w, b, gamma, beta)
    jax.block_until_ready(y)

    y_ref = _reference(x, w, b, gamma, beta)
    assert y.shape == (B, S, H)
    assert jnp.allclose(y, y_ref, atol=1e-4, rtol=1e-4), "mismatch vs reference"

    print("KERNEL_OK")
</pallas_src>

<mosaic_0001>
module attributes {stable_mosaic.version = 11 : i64} {
  func.func @_residual_norm_kernel_fused(%arg0: i32, %arg1: memref<8x32xf32, #tpu.memory_space<vmem>>, %arg2: memref<32x32xf32, #tpu.memory_space<vmem>>, %arg3: memref<3x32xf32, #tpu.memory_space<vmem>>, %arg4: memref<8x32xf32, #tpu.memory_space<vmem>>) attributes {dimension_semantics = [#tpu.dimension_semantics<parallel>], iteration_bounds = array<i64: 2>, scalar_prefetch = 0 : i64, scratch_operands = 0 : i64, tpu.core_type = #tpu.core_type<tc>, window_params = [{transform_indices = @transform_0, window_bounds = array<i64: 8, 32>}, {pipeline_mode = #tpu.pipeline_mode<synchronous>, transform_indices = @transform_1, window_bounds = array<i64: 32, 32>}, {pipeline_mode = #tpu.pipeline_mode<synchronous>, transform_indices = @transform_2, window_bounds = array<i64: 3, 32>}, {transform_indices = @transform_3, window_bounds = array<i64: 8, 32>}]} {
    %c0 = arith.constant 0 : index
    %c0_0 = arith.constant 0 : index
    %0 = vector.load %arg1[%c0, %c0_0] : memref<8x32xf32, #tpu.memory_space<vmem>>, vector<8x32xf32>
    %c0_1 = arith.constant 0 : index
    %c0_2 = arith.constant 0 : index
    %1 = vector.load %arg3[%c0_1, %c0_2] : memref<3x32xf32, #tpu.memory_space<vmem>>, vector<3x32xf32>
    %c0_3 = arith.constant 0 : index
    %c0_4 = arith.constant 0 : index
    %2 = vector.load %arg2[%c0_3, %c0_4] : memref<32x32xf32, #tpu.memory_space<vmem>>, vector<32x32xf32>
    %cst = arith.constant dense<0.000000e+00> : vector<8x32xf32>
    %3 = tpu.matmul %0, %2, %cst {dimension_numbers = #tpu.dot_dimension_numbers<[1], [0], [0], [1], [0, 0, 1, 1], [], []>} : vector<8x32xf32>, vector<32x32xf32>, vector<8x32xf32> -> vector<8x32xf32>
    %4 = arith.addf %3, %0 : vector<8x32xf32>
    %5 = vector.extract_strided_slice %1 {offsets = [0, 0], sizes = [1, 32], strides = [1, 1]} : vector<3x32xf32> to vector<1x32xf32>
    %6 = vector.shape_cast %5 : vector<1x32xf32> to vector<32xf32>
    %7 = vector.shape_cast %6 : vector<32xf32> to vector<1x32xf32>
    %8 = vector.broadcast %7 : vector<1x32xf32> to vector<8x32xf32>
    %9 = arith.addf %4, %8 : vector<8x32xf32>
    %cst_5 = arith.constant dense<0.000000e+00> : vector<8xf32>
    %10 = vector.multi_reduction <add>, %9, %cst_5 [1] : vector<8x32xf32> to vector<8xf32>
    %11 = vector.shape_cast %10 : vector<8xf32> to vector<8x1xf32>
    %12 = arith.mulf %9, %9 : vector<8x32xf32>
    %cst_6 = arith.constant dense<0.000000e+00> : vector<8xf32>
    %13 = vector.multi_reduction <add>, %12, %cst_6 [1] : vector<8x32xf32> to vector<8xf32>
    %14 = vector.shape_cast %13 : vector<8xf32> to vector<8x1xf32>
    %cst_7 = arith.constant 3.125000e-02 : f32
    %15 = vector.broadcast %cst_7 : f32 to vector<8x1xf32>
    %16 = arith.mulf %11, %15 : vector<8x1xf32>
    %cst_8 = arith.constant 3.125000e-02 : f32
    %17 = vector.broadcast %cst_8 : f32 to vector<8x1xf32>
    %18 = arith.mulf %14, %17 : vector<8x1xf32>
    %19 = arith.mulf %16, %16 : vector<8x1xf32>
    %20 = arith.subf %18, %19 : vector<8x1xf32>
    %cst_9 = arith.constant 9.99999974E-6 : f32
    %21 = vector.broadcast %cst_9 : f32 to vector<8x1xf32>
    %22 = arith.addf %20, %21 : vector<8x1xf32>
    %23 = math.rsqrt %22 : vector<8x1xf32>
    %24 = vector.broadcast %16 : vector<8x1xf32> to vector<8x32xf32>
    %25 = arith.subf %9, %24 : vector<8x32xf32>
    %26 = vector.broadcast %23 : vector<8x1xf32> to vector<8x32xf32>
    %27 = arith.mulf %25, %26 : vector<8x32xf32>
    %28 = vector.extract_strided_slice %1 {offsets = [1, 0], sizes = [1, 32], strides = [1, 1]} : vector<3x32xf32> to vector<1x32xf32>
    %29 = vector.shape_cast %28 : vector<1x32xf32> to vector<32xf32>
    %30 = vector.shape_cast %29 : vector<32xf32> to vector<1x32xf32>
    %31 = vector.broadcast %30 : vector<1x32xf32> to vector<8x32xf32>
    %32 = arith.mulf %27, %31 : vector<8x32xf32>
    %33 = vector.extract_strided_slice %1 {offsets = [2, 0], sizes = [1, 32], strides = [1, 1]} : vector<3x32xf32> to vector<1x32xf32>
    %34 = vector.shape_cast %33 : vector<1x32xf32> to vector<32xf32>
    %35 = vector.shape_cast %34 : vector<32xf32> to vector<1x32xf32>
    %36 = vector.broadcast %35 : vector<1x32xf32> to vector<8x32xf32>
    %37 = arith.addf %32, %36 : vector<8x32xf32>
    %c0_10 = arith.constant 0 : index
    %c0_11 = arith.constant 0 : index
    %38 = vector.load %arg4[%c0_10, %c0_11] : memref<8x32xf32, #tpu.memory_space<vmem>>, vector<8x32xf32>
    tpu.vector_store %arg4[%c0_10, %c0_11], %37 {strides = array<i32>} : memref<8x32xf32, #tpu.memory_space<vmem>>, vector<8x32xf32>,
    return
  }
  func.func @transform_0(%arg0: i32) -> (i32, i32) {
    %c0_i32 = arith.constant 0 : i32
    %c0_i32_0 = arith.constant 0 : i32
    return %arg0, %c0_i32 : i32, i32
  }
  func.func @transform_1(%arg0: i32) -> (i32, i32) {
    %c0_i32 = arith.constant 0 : i32
    %c0_i32_0 = arith.constant 0 : i32
    %c0_i32_1 = arith.constant 0 : i32
    return %c0_i32, %c0_i32_0 : i32, i32
  }
  func.func @transform_2(%arg0: i32) -> (i32, i32) {
    %c0_i32 = arith.constant 0 : i32
    %c0_i32_0 = arith.constant 0 : i32
    %c0_i32_1 = arith.constant 0 : i32
    return %c0_i32, %c0_i32_0 : i32, i32
  }
  func.func @transform_3(%arg0: i32) -> (i32, i32) {
    %c0_i32 = arith.constant 0 : i32
    %c0_i32_0 = arith.constant 0 : i32
    return %arg0, %c0_i32 : i32, i32
  }
}

</mosaic_0001>

<llo_original>
// kernel: residual_norm.1
$region0: #{residual_norm.1}
  #allocation0 [shape = 'u32[]', space=smem, size = 0x4, offset = 0x4, fixed_abs, tag = 'smem constant byte address 0x4 - core index']
  #allocation1 [shape = 'u32[144,128]{1,0:T(1,128)}', space=vmem, size = 0x12000, scoped, tag = 'internal scratch']
  %s0 = inlined_call_operand.hbm [shape: f32[16,32], index: 0, kind: input, shape index: {}]
  %s1 = inlined_call_operand.hbm [shape: f32[32,32], index: 1, kind: input, shape index: {}]
  %s2 = inlined_call_operand.vmem [shape: f32[3,32], index: 2, kind: input, shape index: {}]
  %s3 = inlined_call_operand.hbm [shape: f32[16,32], index: 3, kind: output, shape index: {}]
  %s4 = sld [smem:[#allocation0]]
  $region53: #{residual_norm.1} parent=0
    _
  %s6 = ssub.s32 1, %s4
  %s7 = scalar_select 0, %s6, %s4
  $region1: #{residual_norm.1} parent=0
    #allocation2 [shape = 'u8[8192]{0}', space=vmem, size = 0x2000, scoped, tag = 'input window, operand 0']
    #allocation3 [shape = 's32[2]{0}', space=sflag, size = 0x8, scoped, tag = 'scoped memory for residual_norm.1']
    #allocation4 [shape = 's32[2]{0}', space=sflag, size = 0x8, scoped, tag = 'scoped memory for residual_norm.1']
    #allocation5 [shape = 'u8[16384]{0}', space=vmem, size = 0x4000, scoped, tag = 'input window, operand 1, single buffered']
    #allocation6 [shape = 's32[1]{0}', space=sflag, size = 0x4, scoped, tag = 'scoped memory for residual_norm.1']
    #allocation7 [shape = 'u8[8192]{0}', space=vmem, size = 0x2000, scoped, tag = 'output window, operand 0']
    %8 = vsyncpa [#allocation3], 0
    %s9 = scalar_lea.sflag [#allocation3], 1
    %10 = vsyncpa %s9, 0
    %11 = vsyncpa [#allocation6], 0
    %12 = vsyncpa [#allocation4], 0
    %s13 = scalar_lea.sflag [#allocation4], 1
    %14 = vsyncpa %s13, 0
    loop: start=0, step=1, limit=4
    $region2: #{residual_norm.1} parent=1 // loop_pre_header
      _
    $region3: #{residual_norm.1} parent=1 // loop_header
      %s16 = sphi 0, %s20
      %p17 = scmp.ge.s32.totalorder %s16, 4
      %s26 = sphi 0, %s28
      %s29 = sphi 0, %s26
      %s30 = sphi 0, %s29
      %s46 = sphi 0, %s30
      %s50 = sphi 0, %s50
      %s52 = sphi 0, %s50
      %s53 = sphi 0, %s52
      %s67 = sphi 0, %s53
      %s71 = sphi 0, %s71
      %s73 = sphi 0, %s71
      %s74 = sphi 0, %s73
      %s88 = sphi 0, %s74
      %s94 = sphi 0, %s96
      %s97 = sphi 0, %s94
      %s98 = sphi 0, %s97
      %s114 = sphi 0, %s98
    $region4: #{residual_norm.1} parent=1 // loop_header_branch
      %19 = sbr.rel (%p17) target = $region8
    $region5: #{residual_norm.1} parent=1 // loop_body
      %s21 = ssub.s32 %s16, 1
      %s22 = ssub.s32 %s16, 2
      %s23 = sadd.s32 %s16, 1
      %s24 = ssub.s32 %s16, %s23
      %p25 = scmp.eq.s32.totalorder %s24, 0
      %s27 = sadd.s32 %s26, 1
      %s28 = scalar_select %p25, %s26, %s27
      %p31 = pneg %p25
      %p32 = scmp.eq.s32.totalorder %s16, 1
      %p33 = por %p31, %p32
      %p34 = scmp.ne.s32.totalorder %s26, %s29
      %p35 = scmp.eq.s32.totalorder %s16, 0
      %p36 = por %p34, %p35
      %p37 = scmp.ne.s32.totalorder %s26, %s29
      %p38 = scmp.eq.s32.totalorder %s21, 1
      %p39 = por %p37, %p38
      %p40 = scmp.ne.s32.totalorder %s29, %s30
      %p41 = scmp.eq.s32.totalorder %s21, 0
      %p42 = por %p40, %p41
      %p43 = scmp.ne.s32.totalorder %s29, %s30
      %p44 = scmp.eq.s32.totalorder %s22, 1
      %p45 = por %p43, %p44
      %p47 = scmp.ne.s32.totalorder %s30, %s46
      %p48 = scmp.eq.s32.totalorder %s22, 0
      %p49 = por %p47, %p48
      %s51 = sadd.s32 %s50, 1
      %p54 = scmp.eq.s32.totalorder %s16, 1
      %p55 = scmp.ne.s32.totalorder %s50, %s52
      %p56 = scmp.eq.s32.totalorder %s16, 0
      %p57 = por %p55, %p56
      %p58 = scmp.ne.s32.totalorder %s50, %s52
      %p59 = scmp.eq.s32.totalorder %s21, 1
      %p60 = por %p58, %p59
      %p61 = scmp.ne.s32.totalorder %s52, %s53
      %p62 = scmp.eq.s32.totalorder %s21, 0
      %p63 = por %p61, %p62
      %p64 = scmp.ne.s32.totalorder %s52, %s53
      %p65 = scmp.eq.s32.totalorder %s22, 1
      %p66 = por %p64, %p65
      %p68 = scmp.ne.s32.totalorder %s53, %s67
      %p69 = scmp.eq.s32.totalorder %s22, 0
      %p70 = por %p68, %p69
      %s72 = sadd.s32 %s71, 1
      %p75 = scmp.eq.s32.totalorder %s16, 1
      %p76 = scmp.ne.s32.totalorder %s71, %s73
      %p77 = scmp.eq.s32.totalorder %s16, 0
      %p78 = por %p76, %p77
      %p79 = scmp.ne.s32.totalorder %s71, %s73
      %p80 = scmp.eq.s32.totalorder %s21, 1
      %p81 = por %p79, %p80
      %p82 = scmp.ne.s32.totalorder %s73, %s74
      %p83 = scmp.eq.s32.totalorder %s21, 0
      %p84 = por %p82, %p83
      %p85 = scmp.ne.s32.totalorder %s73, %s74
      %p86 = scmp.eq.s32.totalorder %s22, 1
      %p87 = por %p85, %p86
      %p89 = scmp.ne.s32.totalorder %s74, %s88
      %p90 = scmp.eq.s32.totalorder %s22, 0
      %p91 = por %p89, %p90
      %s92 = ssub.s32 %s16, %s23
      %p93 = scmp.eq.s32.totalorder %s92, 0
      %s95 = sadd.s32 %s94, 1
      %s96 = scalar_select %p93, %s94, %s95
      %p99 = pneg %p93
      %p100 = scmp.eq.s32.totalorder %s16, 1
      %p101 = por %p99, %p100
      %p102 = scmp.ne.s32.totalorder %s94, %s97
      %p103 = scmp.eq.s32.totalorder %s16, 0
      %p104 = por %p102, %p103
      %p105 = scmp.ne.s32.totalorder %s94, %s97
      %p106 = scmp.eq.s32.totalorder %s21, 1
      %p107 = por %p105, %p106
      %p108 = scmp.ne.s32.totalorder %s97, %s98
      %p109 = scmp.eq.s32.totalorder %s21, 0
      %p110 = por %p108, %p109
      %p111 = scmp.ne.s32.totalorder %s97, %s98
      %p112 = scmp.eq.s32.totalorder %s22, 1
      %p113 = por %p111, %p112
      %p115 = scmp.ne.s32.totalorder %s98, %s114
      %p116 = scmp.eq.s32.totalorder %s22, 0
      %p117 = por %p115, %p116
      %p118 = scmp.le.s32.totalorder 1, %s16
      %p119 = scmp.lt.s32.totalorder %s16, 3
      %p120 = pnand %p118, %p119
      %p121 = pneg %p120
      // Predicated region
      $region9: #{residual_norm.1} parent=5 // pred_check
        _
      $region10: #{residual_norm.1} parent=5 // pred_check_branch
        %123 = sbr.rel (%p120) target = $region12
      $region11: #{residual_norm.1} parent=5 // pred_region
        %s124 = ssub.s32 %s16, 1
        // Predicated region
        $region13: #{residual_norm.1} parent=11 // pred_check
          %p125 = pneg %p63
        $region14: #{residual_norm.1} parent=11 // pred_check_branch
          %127 = sbr.rel (%p125) target = $region16
        $region15: #{residual_norm.1} parent=11 // pred_region
          %s129 = ssub.s32 512, 512
          %130 = vsyncadd [#allocation6], %s129
          %s131 = sshll.u32 [#allocation5], 4
          %s132 = int_to_ptr.vmem [resolvable:$true] %s131
          %137 = dma.hbm_to_vmem [thread:$0]  %s1, 512, %s132, [#allocation6], 128, 128, 8
        $region16: #{residual_norm.1} parent=11 // pred_fallthru
          _
        // Predicated region
        $region17: #{residual_norm.1} parent=11 // pred_check
          %p138 = pneg %p84
        $region18: #{residual_norm.1} parent=11 // pred_check_branch
          %140 = sbr.rel (%p138) target = $region20
        $region19: #{residual_norm.1} parent=11 // pred_region
          _
        $region20: #{residual_norm.1} parent=11 // pred_fallthru
          _
      $region12: #{residual_norm.1} parent=5 // pred_fallthru
        _
      %p141 = scmp.lt.s32.totalorder %s16, 2
      // Predicated region
      $region21: #{residual_norm.1} parent=5 // pred_check
        %p142 = pneg %p141
      $region22: #{residual_norm.1} parent=5 // pred_check_branch
        %144 = sbr.rel (%p142) target = $region24
      $region23: #{residual_norm.1} parent=5 // pred_region
        // Predicated region
        $region25: #{residual_norm.1} parent=23 // pred_check
          %p145 = pneg %p36
        $region26: #{residual_norm.1} parent=23 // pred_check_branch
          %147 = sbr.rel (%p145) target = $region28
        $region27: #{residual_norm.1} parent=23 // pred_region
          %s148 = sand.u32 %s26, 1
          %s149 = scalar_lea.sflag [#allocation3], %s148
          %s150 = sand.u32 %s26, 1
          %s151 = smul.addr %s150, 8
          %s152 = scalar_lea.vmem [#allocation2], %s151
          %s154 = ssub.s32 128, 128
          %155 = vsyncadd %s149, %s154
          %s156 = smul.addr %s16, 128
          %s157 = scalar_lea.hbm %s0, %s156
          %s159 = sshll.u32 %s152, 4
          %s160 = int_to_ptr.vmem [resolvable:$true] %s159
          %162 = dma.hbm_to_vmem [thread:$0]  %s157, 128, %s160, %s149
        $region28: #{residual_norm.1} parent=23 // pred_fallthru
          _
      $region24: #{residual_norm.1} parent=5 // pred_fallthru
        _
      %p163 = scmp.le.s32.totalorder 1, %s16
      %p164 = scmp.lt.s32.totalorder %s16, 3
      %p165 = pnand %p163, %p164
      %p166 = pneg %p165
      // Predicated region
      $region29: #{residual_norm.1} parent=5 // pred_check
        _
      $region30: #{residual_norm.1} parent=5 // pred_check_branch
        %168 = sbr.rel (%p165) target = $region32
      $region31: #{residual_norm.1} parent=5 // pred_region
        %s169 = ssub.s32 %s16, 1
        %s170 = sand.u32 %s29, 1
        %s171 = scalar_lea.sflag [#allocation3], %s170
        %s172 = sand.u32 %s29, 1
        %s173 = smul.addr %s172, 8
        %s174 = scalar_lea.vmem [#allocation2], %s173
        // Predicated region
        $region33: #{residual_norm.1} parent=31 // pred_check
          %p175 = pneg %p42
        $region34: #{residual_norm.1} parent=31 // pred_check_branch
          %177 = sbr.rel (%p175) target = $region36
        $region35: #{residual_norm.1} parent=31 // pred_region
          %178 = dma.done %s171, 128
        $region36: #{residual_norm.1} parent=31 // pred_fallthru
          _
        // Predicated region
        $region37: #{residual_norm.1} parent=31 // pred_check
          %p179 = pneg %p63
        $region38: #{residual_norm.1} parent=31 // pred_check_branch
          %181 = sbr.rel (%p179) target = $region40
        $region39: #{residual_norm.1} parent=31 // pred_region
          %182 = dma.done [#allocation6], 512
        $region40: #{residual_norm.1} parent=31 // pred_fallthru
          _
        %s183 = sand.u32 %s29, 1
        %s184 = scalar_lea.sflag [#allocation3], %s183
        %s185 = sand.u32 %s29, 1
        %s186 = smul.addr %s185, 8
        %s187 = scalar_lea.vmem [#allocation2], %s186
        %p188 = pneg %p42
        %p189 = pneg %p39
        %p190 = pneg %p63
        %p191 = pneg %p60
        %p192 = pneg %p84
        %p193 = pneg %p81
        %p194 = pneg %p110
        %p195 = pneg %p107
        %s196 = sand.u32 %s97, 1
        %s197 = scalar_lea.sflag [#allocation4], %s196
        %s198 = sand.u32 %s97, 1
        %s199 = smul.addr %s198, 8
        %s200 = scalar_lea.vmem [#allocation7], %s199
        %v201 = vld [vmem:[%s174] sm:$0xff]
        %v202 = vld [vmem:[%s2] sm:$0x7]
        %v203 = vld [vmem:[#allocation5] sm:$0xff]
        %v204 = vld [vmem:[#allocation5 + $0x8] sm:$0xff]
        %v205 = vld [vmem:[#allocation5 + $0x10] sm:$0xff]
        %v206 = vld [vmem:[#allocation5 + $0x18] sm:$0xff]
        %vm207 = vcmask 261120
        %v209 = vsel %vm207, %v201, 0
        %211 = vmatprep.subr.mxu0 0.0
        %212 = vmatpush1.msra.mxu0 0.0
        %213 = vmatprep.subr.mxu0 0.0
        %214 = vmatpush1.msra.mxu0 0.0
        %215 = vmatprep.subr.mxu0 0.0
        %216 = vmatpush1.msra.mxu0 0.0
        %217 = vmatprep.subr.mxu0 0.0
        %218 = vmatpush1.msra.mxu0 0.0
        %219 = vmatprep.subr.mxu0 0.0
        %220 = vmatpush1.msra.mxu0 0.0
        %221 = vmatprep.subr.mxu0 0.0
        %222 = vmatpush1.msra.mxu0 0.0
        %223 = vmatprep.subr.mxu0 0.0
        %224 = vmatpush1.msra.mxu0 0.0
        %225 = vmatprep.subr.mxu0 0.0
        %226 = vmatpush1.msra.mxu0 0.0
        %227 = vmatprep.subr.mxu0 0.0
        %228 = vmatpush1.msra.mxu0 0.0
        %229 = vmatprep.subr.mxu0 0.0
        %230 = vmatpush1.msra.mxu0 0.0
        %231 = vmatprep.subr.mxu0 0.0
        %232 = vmatpush1.msra.mxu0 0.0
        %233 = vmatprep.subr.mxu0 0.0
        %234 = vmatpush1.msra.mxu0 0.0
        %235 = vmatprep.subr.mxu0 0.0
        %236 = vmatpush1.msra.mxu0 %v206
        %237 = vmatprep.subr.mxu0 0.0
        %238 = vmatpush1.msra.mxu0 %v205
        %239 = vmatprep.subr.mxu0 0.0
        %240 = vmatpush1.msra.mxu0 %v204
        %241 = vmatprep.subr.mxu0 0.0
        %242 = vmatpush1.msra.mxu0 %v203
        %243 = vmatprep.subr.mxu0 0.0
        %244 = vmatpush2.msra.mxu0 0.0
        %245 = vmatprep.subr.mxu0 0.0
        %246 = vmatpush2.msra.mxu0 0.0
        %247 = vmatprep.subr.mxu0 0.0
        %248 = vmatpush2.msra.mxu0 0.0
        %249 = vmatprep.subr.mxu0 0.0
        %250 = vmatpush2.msra.mxu0 0.0
        %251 = vmatprep.subr.mxu0 0.0
        %252 = vmatpush2.msra.mxu0 0.0
        %253 = vmatprep.subr.mxu0 0.0
        %254 = vmatpush2.msra.mxu0 0.0
        %255 = vmatprep.subr.mxu0 0.0
        %256 = vmatpush2.msra.mxu0 0.0
        %257 = vmatprep.subr.mxu0 0.0
        %258 = vmatpush2.msra.mxu0 0.0
        %259 = vmatprep.subr.mxu0 0.0
        %260 = vmatpush2.msra.mxu0 0.0
        %261 = vmatprep.subr.mxu0 0.0
        %262 = vmatpush2.msra.mxu0 0.0
        %263 = vmatprep.subr.mxu0 0.0
        %264 = vmatpush2.msra.mxu0 0.0
        %265 = vmatprep.subr.mxu0 0.0
        %266 = vmatpush2.msra.mxu0 0.0
        %267 = vmatprep.subr.mxu0 0.0
        %268 = vmatpush2.msra.mxu0 0.0
        %269 = vmatprep.subr.mxu0 0.0
        %270 = vmatpush2.msra.mxu0 0.0
        %271 = vmatprep.subr.mxu0 0.0
        %272 = vmatpush2.msra.mxu0 0.0
        %273 = vmatprep.subr.mxu0 0.0
        %274 = vmatpush2.msra.mxu0 0.0
        %275 = vmatprep.mubr.f32.mxu0 0.0
        %276 = vmatmul.mubr.f32.gmra.mxu0 %v209
        %v277 = vpop.f32.mrf.mxu0
        %v278 = vadd.f32 %v201, %v277
        %v279 = vpop.f32.mrf.mxu0
        %280 = vdwg.mxu0
        %v281 = vlaneseq
        %v282 = vshrl.u32 %v281, 7
        %v283 = vsub.s32 0, %v282
        %v284 = vrot.slane %v202, %v283
        %v285 = vadd.f32 %v278, %v284
        %v286 = vsel %vm207, %v285, 0.0
        %287 = vadd.xlane.f32.xlu0 %v286
        %v288 = vpop.xlane.xlu0 %287
        %v289 = vmul.f32 %v285, %v285
        %v290 = vsel %vm207, %v289, 0.0
        %291 = vadd.xlane.f32.xlu0 %v290
        %v292 = vpop.xlane.xlu0 %291
        %v293 = vmul.f32 %v288, 0.03125
        %v294 = vmul.f32 %v292, 0.03125
        %v295 = vmul.f32 %v293, %v293
        %v296 = vsub.f32 %v294, %v295
        %v297 = vadd.f32 %v296, 1e-05
        %v298 = vrsqrt.pop %v297
        %v299 = vsub.f32 %v285, %v293
        %v300 = vmul.f32 %v299, %v298
        %v301 = vlaneseq
        %v302 = vshrl.u32 %v301, 7
        %v303 = vsub.s32 1, %v302
        %v304 = vrot.slane %v202, %v303
        %v305 = vmul.f32 %v300, %v304
        %v306 = vlaneseq
        %v307 = vshrl.u32 %v306, 7
        %v308 = vsub.s32 2, %v307
        %v309 = vrot.slane %v202, %v308
        %v310 = vadd.f32 %v305, %v309
        %311 = vst.msk [vmem:[%s200] sm:$0xff] %vm207, %v310
        %s312 = sand.u32 %s97, 1
        %s313 = scalar_lea.sflag [#allocation4], %s312
        %s314 = sand.u32 %s97, 1
        %s315 = smul.addr %s314, 8
        %s316 = scalar_lea.vmem [#allocation7], %s315
        // Predicated region
        $region41: #{residual_norm.1} parent=31 // pred_check
          %p317 = pneg %p107
        $region42: #{residual_norm.1} parent=31 // pred_check_branch
          %319 = sbr.rel (%p317) target = $region44
        $region43: #{residual_norm.1} parent=31 // pred_region
          %s321 = ssub.s32 128, 128
          %322 = vsyncadd %s313, %s321
          %s323 = smul.addr %s21, 128
          %s324 = scalar_lea.hbm %s3, %s323
          %s326 = sshll.u32 %s316, 4
          %s327 = int_to_ptr.vmem [resolvable:$true] %s326
          %329 = dma.vmem_to_hbm [thread:$0]  %s327, 128, %s324, %s313
        $region44: #{residual_norm.1} parent=31 // pred_fallthru
          _
      $region32: #{residual_norm.1} parent=5 // pred_fallthru
        _
      %p330 = scmp.le.s32.totalorder 2, %s16
      // Predicated region
      $region45: #{residual_norm.1} parent=5 // pred_check
        %p331 = pneg %p330
      $region46: #{residual_norm.1} parent=5 // pred_check_branch
        %333 = sbr.rel (%p331) target = $region48
      $region47: #{residual_norm.1} parent=5 // pred_region
        %s334 = ssub.s32 %s16, 2
        // Predicated region
        $region49: #{residual_norm.1} parent=47 // pred_check
          %p335 = pneg %p113
        $region50: #{residual_norm.1} parent=47 // pred_check_branch
          %337 = sbr.rel (%p335) target = $region52
        $region51: #{residual_norm.1} parent=47 // pred_region
          %s338 = sand.u32 %s98, 1
          %s339 = scalar_lea.sflag [#allocation4], %s338
          %s340 = sand.u32 %s98, 1
          %s341 = smul.addr %s340, 8
          %s342 = scalar_lea.vmem [#allocation7], %s341
          %343 = dma.done %s339, 128
        $region52: #{residual_norm.1} parent=47 // pred_fallthru
          _
      $region48: #{residual_norm.1} parent=5 // pred_fallthru
        _
    $region6: #{residual_norm.1} parent=1 // loop_footer
      %s20 = sadd.s32 1, %s16
    $region7: #{residual_norm.1} parent=1 // loop_footer_branch
      %15 = sbr.rel target = $region3
    $region8: #{residual_norm.1} parent=1 // loop_exit
      _
    %344 = vsyncpa [#allocation3], 1
    %s345 = scalar_lea.sflag [#allocation3], 1
    %346 = vsyncpa %s345, 1
    %347 = vsyncpa [#allocation6], 1
    %348 = vsyncpa [#allocation4], 1
    %s349 = scalar_lea.sflag [#allocation4], 1
    %350 = vsyncpa %s349, 1

</llo_original>
